<compile_context>
chip_gen: v5e
topology: v5e:2x2
jax: 0.10.0
libtpu: 0.0.40
codegen_flags: <defaults>
</compile_context>

<pallas_src>
import jax
import jax.numpy as jnp
from jax.experimental import pallas as pl
from jax.experimental.pallas import tpu as pltpu


# ------------------------------ fused kernel --------------------------------

def _cell_update(gates, c_prev, H):
    """PyTorch LSTM gate order (i, f, g, o); two full-vreg transcendental passes."""
    sig = jax.nn.sigmoid(gates)
    tnh = jnp.tanh(gates)
    i = sig[:, 0 * H:1 * H]
    f = sig[:, 1 * H:2 * H]
    g = tnh[:, 2 * H:3 * H]
    o = sig[:, 3 * H:4 * H]
    c_new = f * c_prev + i * g
    h_new = o * jnp.tanh(c_new)
    return h_new, c_new


def fused_rnn_steps_kernel(tokens_ref, h_in_ref, c_in_ref, emb_gate0_ref, *rest):
    """One grid step == one application of RNN.forward().

    rest layout (refs):
      rest[0:2]                      layer-0 (W_hh0^T, bias0)
      rest[2 : 2+3*(L-1)]            per-layer (W_ih^T, W_hh^T, bias) for l >= 1
      next 2                         decoder (W^T padded, bias padded)
      next 3                         outputs: (logits_pad, h_new, c_new)
      last 2                         scratch: (h_state, c_state) in VMEM
    """
    L, B, H = h_in_ref.shape
    n_lw = 2 + 3 * (L - 1)
    layer_refs = rest[:n_lw]
    dec_w_ref, dec_b_ref = rest[n_lw], rest[n_lw + 1]
    out_ref, h_out_ref, c_out_ref = rest[n_lw + 2], rest[n_lw + 3], rest[n_lw + 4]
    h_sc, c_sc = rest[n_lw + 5], rest[n_lw + 6]

    t = pl.program_id(0)

    # ---- load initial state into persistent VMEM scratch at the first step ----
    @pl.when(t == 0)
    def _():
        h_sc[...] = h_in_ref[...]
        c_sc[...] = c_in_ref[...]

    # ---- layer 0: embedding folded into W_ih -> row lookup gives x @ W_ih0^T ----
    w_hh_ref, b_ref = layer_refs[0], layer_refs[1]
    rows = [emb_gate0_ref[pl.ds(tokens_ref[t, b], 1), :] for b in range(B)]
    x_gates = jnp.concatenate(rows, axis=0)                         # (B, 4H)
    h_prev = h_sc[0]
    c_prev = c_sc[0]
    gates = (x_gates
             + jnp.dot(h_prev, w_hh_ref[...],
                       preferred_element_type=jnp.float32)
             + b_ref[...])
    h_new, c_new = _cell_update(gates, c_prev, H)
    h_sc[0] = h_new
    c_sc[0] = c_new
    x = h_new

    # ---- layers 1..L-1: two dots, no lane-dim concatenate ----
    idx = 2
    for l in range(1, L):
        w_ih_ref, w_hh_ref, b_ref = (layer_refs[idx], layer_refs[idx + 1],
                                     layer_refs[idx + 2])
        idx += 3
        h_prev = h_sc[l]
        c_prev = c_sc[l]
        gates = (jnp.dot(x, w_ih_ref[...], preferred_element_type=jnp.float32)
                 + jnp.dot(h_prev, w_hh_ref[...],
                           preferred_element_type=jnp.float32)
                 + b_ref[...])
        h_new, c_new = _cell_update(gates, c_prev, H)
        h_sc[l] = h_new
        c_sc[l] = c_new
        x = h_new

    # ---- decoder (output lane-padded to 128 => dense vst) ----
    out_ref[0] = (jnp.dot(x, dec_w_ref[...], preferred_element_type=jnp.float32)
                  + dec_b_ref[...]).astype(out_ref.dtype)

    # ---- write final state back to HBM only once ----
    @pl.when(t == pl.num_programs(0) - 1)
    def _():
        h_out_ref[...] = h_sc[...]
        c_out_ref[...] = c_sc[...]


# -------------------------------- wrappers ------------------------------------

def _const_spec(shape):
    """Full-array block with a constant index_map -> DMA'd once, resident in VMEM."""
    n = len(shape)
    return pl.BlockSpec(shape, lambda t, tok, _n=n: (0,) * _n)


def rnn_forward_steps(params, tokens_seq, hidden, cell):
    """Apply RNN.forward() T times (teacher-forced decode), one fused pallas_call.

    tokens_seq: (T, B) int32.  Returns (logits (T,B,O), h (L,B,H), c (L,B,H)).
    """
    T, B = tokens_seq.shape
    L, _, H = hidden.shape
    O = params["output_size"]
    OP = params["dec_w_t_pad"].shape[1]

    weight_args = [params["emb_gate0"]]
    w_hh0, b0 = params["lstm0"]
    weight_args += [w_hh0, b0]
    for (w_ih, w_hh, b) in params["lstm_rest"]:
        weight_args += [w_ih, w_hh, b]
    weight_args += [params["dec_w_t_pad"], params["dec_b_pad"]]

    grid_spec = pltpu.PrefetchScalarGridSpec(
        num_scalar_prefetch=1,              # tokens (T, B) -> SMEM
        grid=(T,),
        in_specs=([_const_spec(hidden.shape), _const_spec(cell.shape)]
                  + [_const_spec(w.shape) for w in weight_args]),
        out_specs=(pl.BlockSpec((1, B, OP), lambda t, tok: (t, 0, 0)),
                   _const_spec(hidden.shape),
                   _const_spec(cell.shape)),
        scratch_shapes=[pltpu.VMEM((L, B, H), jnp.float32),
                        pltpu.VMEM((L, B, H), jnp.float32)],
    )

    logits_pad, h_new, c_new = pl.pallas_call(
        fused_rnn_steps_kernel,
        out_shape=(jax.ShapeDtypeStruct((T, B, OP), jnp.float32),
                   jax.ShapeDtypeStruct((L, B, H), jnp.float32),
                   jax.ShapeDtypeStruct((L, B, H), jnp.float32)),
        grid_spec=grid_spec,
        compiler_params=pltpu.CompilerParams(
            dimension_semantics=("arbitrary",)),   # h/c carry across steps
    )(tokens_seq, hidden, cell, *weight_args)

    return logits_pad[:, :, :O], h_new, c_new


def rnn_forward(params, tokens, hidden, cell):
    """Exact semantics of RNN.forward (seq_len == 1): tokens (B,) -> ((B,O), h, c)."""
    logits, h, c = rnn_forward_steps(params, tokens[None, :], hidden, cell)
    return logits[0], h, c


# ------------------------------ param preparation -----------------------------

def prepare_params(raw, hidden_size, output_size):
    """Fold embedding into layer-0 W_ih, transpose weights, fuse biases, pad decoder."""
    H = hidden_size
    O = output_size
    OP = pl.cdiv(O, 128) * 128

    (w_ih0, w_hh0, b_ih0, b_hh0) = raw["lstm"][0]
    params = {
        "emb_gate0": jnp.dot(raw["embedding"], w_ih0.T),        # (vocab, 4H)
        "lstm0": (w_hh0.T, (b_ih0 + b_hh0).reshape(1, 4 * H)),
        "lstm_rest": [(w_ih.T, w_hh.T, (b_ih + b_hh).reshape(1, 4 * H))
                      for (w_ih, w_hh, b_ih, b_hh) in raw["lstm"][1:]],
        "dec_w_t_pad": jnp.zeros((H, OP), jnp.float32).at[:, :O].set(raw["dec_w"].T),
        "dec_b_pad": jnp.zeros((1, OP), jnp.float32).at[:, :O].set(raw["dec_b"]),
        "output_size": O,
    }
    return params


# ---------------------------- pure-JAX reference -----------------------------

def rnn_forward_steps_ref(raw, tokens_seq, hidden, cell):
    H = hidden.shape[-1]
    hp = jax.lax.Precision.HIGHEST
    outs = []
    h, c = hidden, cell
    for t in range(tokens_seq.shape[0]):
        x = raw["embedding"][tokens_seq[t]]
        new_h, new_c = [], []
        for l, (w_ih, w_hh, b_ih, b_hh) in enumerate(raw["lstm"]):
            gates = (jnp.dot(x, w_ih.T, precision=hp)
                     + jnp.dot(h[l], w_hh.T, precision=hp) + b_ih + b_hh)
            i = jax.nn.sigmoid(gates[:, 0 * H:1 * H])
            f = jax.nn.sigmoid(gates[:, 1 * H:2 * H])
            g = jnp.tanh(gates[:, 2 * H:3 * H])
            o = jax.nn.sigmoid(gates[:, 3 * H:4 * H])
            c_l = f * c[l] + i * g
            h_l = o * jnp.tanh(c_l)
            new_h.append(h_l)
            new_c.append(c_l)
            x = h_l
        h, c = jnp.stack(new_h), jnp.stack(new_c)
        outs.append(jnp.dot(x, raw["dec_w"].T, precision=hp) + raw["dec_b"])
    return jnp.stack(outs), h, c


# --------------------------------- main --------------------------------------

if __name__ == "__main__":
    # module hyper-params (small, deterministic)
    vocab_size = 16        # input_size
    embedding_size = 32
    hidden_size = 32
    output_size = 16
    num_layers = 2
    batch_size = 4
    seq_len = 8            # number of fused decode steps (T)

    key = jax.random.PRNGKey(0)
    keys = jax.random.split(key, 4 + 4 * num_layers)
    bound = 1.0 / jnp.sqrt(hidden_size)

    # nn.Embedding(input_size, embedding_size): weight ~ N(0, 1)
    embedding = jax.random.normal(keys[0], (vocab_size, embedding_size),
                                  jnp.float32)

    # nn.LSTM(embedding_size, hidden_size, num_layers)
    lstm_raw = []
    for l in range(num_layers):
        in_sz = embedding_size if l == 0 else hidden_size
        k0, k1, k2, k3 = keys[1 + 4 * l: 5 + 4 * l]
        w_ih = jax.random.uniform(k0, (4 * hidden_size, in_sz), jnp.float32,
                                  -bound, bound)
        w_hh = jax.random.uniform(k1, (4 * hidden_size, hidden_size), jnp.float32,
                                  -bound, bound)
        b_ih = jax.random.uniform(k2, (4 * hidden_size,), jnp.float32,
                                  -bound, bound)
        b_hh = jax.random.uniform(k3, (4 * hidden_size,), jnp.float32,
                                  -bound, bound)
        lstm_raw.append((w_ih, w_hh, b_ih, b_hh))

    # nn.Linear(hidden_size, output_size)
    dec_w = jax.random.uniform(keys[1 + 4 * num_layers],
                               (output_size, hidden_size), jnp.float32,
                               -bound, bound)
    dec_b = jax.random.uniform(keys[2 + 4 * num_layers],
                               (output_size,), jnp.float32, -bound, bound)

    raw = {"embedding": embedding, "lstm": lstm_raw,
           "dec_w": dec_w, "dec_b": dec_b.reshape(1, output_size)}
    params = prepare_params(raw, hidden_size, output_size)

    # inputs: T steps of token ids (T, B), and init_hidden()-style zero states
    tokens_seq = jax.random.randint(keys[3 + 4 * num_layers],
                                    (seq_len, batch_size), 0, vocab_size)
    hidden0 = jnp.zeros((num_layers, batch_size, hidden_size), jnp.float32)
    cell0 = jnp.zeros((num_layers, batch_size, hidden_size), jnp.float32)

    # ---- multi-step (T forward() applications, one fused kernel) ----
    out_ref, h_ref, c_ref = rnn_forward_steps_ref(raw, tokens_seq, hidden0, cell0)
    out, h_new, c_new = rnn_forward_steps(params, tokens_seq, hidden0, cell0)
    jax.block_until_ready((out, h_new, c_new, out_ref, h_ref, c_ref))

    assert jnp.allclose(out, out_ref, atol=1e-4, rtol=1e-4)
    assert jnp.allclose(h_new, h_ref, atol=1e-4, rtol=1e-4)
    assert jnp.allclose(c_new, c_ref, atol=1e-4, rtol=1e-4)

    # ---- single-step path (exact original forward() semantics) ----
    out1_ref, h1_ref, c1_ref = rnn_forward_steps_ref(raw, tokens_seq[:1],
                                                     hidden0, cell0)
    out1, h1, c1 = rnn_forward(params, tokens_seq[0], hidden0, cell0)
    jax.block_until_ready((out1, h1, c1))

    assert jnp.allclose(out1, out1_ref[0], atol=1e-4, rtol=1e-4)
    assert jnp.allclose(h1, h1_ref, atol=1e-4, rtol=1e-4)
    assert jnp.allclose(c1, c1_ref, atol=1e-4, rtol=1e-4)

    print("KERNEL_OK")
</pallas_src>

<mosaic_0001>
module attributes {stable_mosaic.version = 11 : i64} {
  func.func @fused_rnn_steps_kernel(%arg0: i32, %arg1: memref<8x4xi32, #tpu.memory_space<smem>>, %arg2: memref<2x4x32xf32, #tpu.memory_space<vmem>>, %arg3: memref<2x4x32xf32, #tpu.memory_space<vmem>>, %arg4: memref<16x128xf32, #tpu.memory_space<vmem>>, %arg5: memref<32x128xf32, #tpu.memory_space<vmem>>, %arg6: memref<1x128xf32, #tpu.memory_space<vmem>>, %arg7: memref<32x128xf32, #tpu.memory_space<vmem>>, %arg8: memref<32x128xf32, #tpu.memory_space<vmem>>, %arg9: memref<1x128xf32, #tpu.memory_space<vmem>>, %arg10: memref<32x128xf32, #tpu.memory_space<vmem>>, %arg11: memref<1x128xf32, #tpu.memory_space<vmem>>, %arg12: memref<1x4x128xf32, #tpu.memory_space<vmem>>, %arg13: memref<2x4x32xf32, #tpu.memory_space<vmem>>, %arg14: memref<2x4x32xf32, #tpu.memory_space<vmem>>, %arg15: memref<2x4x32xf32, #tpu.memory_space<vmem>>, %arg16: memref<2x4x32xf32, #tpu.memory_space<vmem>>) attributes {dimension_semantics = [#tpu.dimension_semantics<arbitrary>], iteration_bounds = array<i64: 8>, scalar_prefetch = 1 : i64, scratch_operands = 2 : i64, tpu.core_type = #tpu.core_type<tc>, window_params = [{pipeline_mode = #tpu.pipeline_mode<synchronous>, transform_indices = @transform_0, window_bounds = array<i64: 2, 4, 32>}, {pipeline_mode = #tpu.pipeline_mode<synchronous>, transform_indices = @transform_1, window_bounds = array<i64: 2, 4, 32>}, {pipeline_mode = #tpu.pipeline_mode<synchronous>, transform_indices = @transform_2, window_bounds = array<i64: 16, 128>}, {pipeline_mode = #tpu.pipeline_mode<synchronous>, transform_indices = @transform_3, window_bounds = array<i64: 32, 128>}, {pipeline_mode = #tpu.pipeline_mode<synchronous>, transform_indices = @transform_4, window_bounds = array<i64: 1, 128>}, {pipeline_mode = #tpu.pipeline_mode<synchronous>, transform_indices = @transform_5, window_bounds = array<i64: 32, 128>}, {pipeline_mode = #tpu.pipeline_mode<synchronous>, transform_indices = @transform_6, window_bounds = array<i64: 32, 128>}, {pipeline_mode = #tpu.pipeline_mode<synchronous>, transform_indices = @transform_7, window_bounds = array<i64: 1, 128>}, {pipeline_mode = #tpu.pipeline_mode<synchronous>, transform_indices = @transform_8, window_bounds = array<i64: 32, 128>}, {pipeline_mode = #tpu.pipeline_mode<synchronous>, transform_indices = @transform_9, window_bounds = array<i64: 1, 128>}, {transform_indices = @transform_10, window_bounds = array<i64: 1, 4, 128>}, {pipeline_mode = #tpu.pipeline_mode<synchronous>, transform_indices = @transform_11, window_bounds = array<i64: 2, 4, 32>}, {pipeline_mode = #tpu.pipeline_mode<synchronous>, transform_indices = @transform_12, window_bounds = array<i64: 2, 4, 32>}]} {
    %c0_i32 = arith.constant 0 : i32
    %0 = arith.cmpi eq, %arg0, %c0_i32 : i32
    %1 = arith.extui %0 : i1 to i32
    %c0_i32_0 = arith.constant 0 : i32
    %2 = arith.cmpi ne, %1, %c0_i32_0 : i32
    scf.if %2 {
      %c0_52 = arith.constant 0 : index
      %c0_53 = arith.constant 0 : index
      %c0_54 = arith.constant 0 : index
      %95 = vector.load %arg2[%c0_52, %c0_53, %c0_54] : memref<2x4x32xf32, #tpu.memory_space<vmem>>, vector<2x4x32xf32>
      %c0_55 = arith.constant 0 : index
      %c0_56 = arith.constant 0 : index
      %c0_57 = arith.constant 0 : index
      %96 = vector.load %arg15[%c0_55, %c0_56, %c0_57] : memref<2x4x32xf32, #tpu.memory_space<vmem>>, vector<2x4x32xf32>
      tpu.vector_store %arg15[%c0_55, %c0_56, %c0_57], %95 {strides = array<i32>} : memref<2x4x32xf32, #tpu.memory_space<vmem>>, vector<2x4x32xf32>,
      %c0_58 = arith.constant 0 : index
      %c0_59 = arith.constant 0 : index
      %c0_60 = arith.constant 0 : index
      %97 = vector.load %arg3[%c0_58, %c0_59, %c0_60] : memref<2x4x32xf32, #tpu.memory_space<vmem>>, vector<2x4x32xf32>
      %c0_61 = arith.constant 0 : index
      %c0_62 = arith.constant 0 : index
      %c0_63 = arith.constant 0 : index
      %98 = vector.load %arg16[%c0_61, %c0_62, %c0_63] : memref<2x4x32xf32, #tpu.memory_space<vmem>>, vector<2x4x32xf32>
      tpu.vector_store %arg16[%c0_61, %c0_62, %c0_63], %97 {strides = array<i32>} : memref<2x4x32xf32, #tpu.memory_space<vmem>>, vector<2x4x32xf32>,
    } else {
    }
    %3 = arith.index_cast %arg0 : i32 to index
    %c0 = arith.constant 0 : index
    %4 = memref.load %arg1[%3, %c0] : memref<8x4xi32, #tpu.memory_space<smem>>
    %5 = arith.index_cast %4 : i32 to index
    %c0_1 = arith.constant 0 : index
    %6 = vector.load %arg4[%5, %c0_1] : memref<16x128xf32, #tpu.memory_space<vmem>>, vector<1x128xf32>
    %7 = arith.index_cast %arg0 : i32 to index
    %c1 = arith.constant 1 : index
    %8 = memref.load %arg1[%7, %c1] : memref<8x4xi32, #tpu.memory_space<smem>>
    %9 = arith.index_cast %8 : i32 to index
    %c0_2 = arith.constant 0 : index
    %10 = vector.load %arg4[%9, %c0_2] : memref<16x128xf32, #tpu.memory_space<vmem>>, vector<1x128xf32>
    %11 = arith.index_cast %arg0 : i32 to index
    %c2 = arith.constant 2 : index
    %12 = memref.load %arg1[%11, %c2] : memref<8x4xi32, #tpu.memory_space<smem>>
    %13 = arith.index_cast %12 : i32 to index
    %c0_3 = arith.constant 0 : index
    %14 = vector.load %arg4[%13, %c0_3] : memref<16x128xf32, #tpu.memory_space<vmem>>, vector<1x128xf32>
    %15 = arith.index_cast %arg0 : i32 to index
    %c3 = arith.constant 3 : index
    %16 = memref.load %arg1[%15, %c3] : memref<8x4xi32, #tpu.memory_space<smem>>
    %17 = arith.index_cast %16 : i32 to index
    %c0_4 = arith.constant 0 : index
    %18 = vector.load %arg4[%17, %c0_4] : memref<16x128xf32, #tpu.memory_space<vmem>>, vector<1x128xf32>
    %19 = tpu.concatenate %6, %10, %14, %18 in 0 : vector<1x128xf32>, vector<1x128xf32>, vector<1x128xf32>, vector<1x128xf32> -> vector<4x128xf32>
    %c0_5 = arith.constant 0 : index
    %c0_6 = arith.constant 0 : index
    %c0_7 = arith.constant 0 : index
    %20 = vector.load %arg15[%c0_5, %c0_6, %c0_7] : memref<2x4x32xf32, #tpu.memory_space<vmem>>, vector<1x4x32xf32>
    %21 = vector.shape_cast %20 : vector<1x4x32xf32> to vector<4x32xf32>
    %c0_8 = arith.constant 0 : index
    %c0_9 = arith.constant 0 : index
    %c0_10 = arith.constant 0 : index
    %22 = vector.load %arg16[%c0_8, %c0_9, %c0_10] : memref<2x4x32xf32, #tpu.memory_space<vmem>>, vector<1x4x32xf32>
    %23 = vector.shape_cast %22 : vector<1x4x32xf32> to vector<4x32xf32>
    %c0_11 = arith.constant 0 : index
    %c0_12 = arith.constant 0 : index
    %24 = vector.load %arg5[%c0_11, %c0_12] : memref<32x128xf32, #tpu.memory_space<vmem>>, vector<32x128xf32>
    %cst = arith.constant dense<0.000000e+00> : vector<4x128xf32>
    %25 = tpu.matmul %21, %24, %cst {dimension_numbers = #tpu.dot_dimension_numbers<[1], [0], [0], [1], [0, 0, 1, 1], [], []>} : vector<4x32xf32>, vector<32x128xf32>, vector<4x128xf32> -> vector<4x128xf32>
    %26 = arith.addf %19, %25 : vector<4x128xf32>
    %c0_13 = arith.constant 0 : index
    %c0_14 = arith.constant 0 : index
    %27 = vector.load %arg6[%c0_13, %c0_14] : memref<1x128xf32, #tpu.memory_space<vmem>>, vector<1x128xf32>
    %28 = vector.broadcast %27 : vector<1x128xf32> to vector<4x128xf32>
    %29 = arith.addf %26, %28 : vector<4x128xf32>
    %30 = arith.negf %29 : vector<4x128xf32>
    %31 = math.exp %30 : vector<4x128xf32>
    %cst_15 = arith.constant 1.000000e+00 : f32
    %32 = vector.broadcast %cst_15 : f32 to vector<4x128xf32>
    %33 = arith.addf %32, %31 : vector<4x128xf32>
    %34 = arith.divf %32, %33 : vector<4x128xf32>
    %35 = math.tanh %29 : vector<4x128xf32>
    %36 = vector.extract_strided_slice %34 {offsets = [0, 0], sizes = [4, 32], strides = [1, 1]} : vector<4x128xf32> to vector<4x32xf32>
    %37 = vector.extract_strided_slice %34 {offsets = [0, 32], sizes = [4, 32], strides = [1, 1]} : vector<4x128xf32> to vector<4x32xf32>
    %38 = vector.extract_strided_slice %35 {offsets = [0, 64], sizes = [4, 32], strides = [1, 1]} : vector<4x128xf32> to vector<4x32xf32>
    %39 = vector.extract_strided_slice %34 {offsets = [0, 96], sizes = [4, 32], strides = [1, 1]} : vector<4x128xf32> to vector<4x32xf32>
    %40 = arith.mulf %37, %23 : vector<4x32xf32>
    %41 = arith.mulf %36, %38 : vector<4x32xf32>
    %42 = arith.addf %40, %41 : vector<4x32xf32>
    %43 = math.tanh %42 : vector<4x32xf32>
    %44 = arith.mulf %39, %43 : vector<4x32xf32>
    %c0_16 = arith.constant 0 : index
    %c0_17 = arith.constant 0 : index
    %c0_18 = arith.constant 0 : index
    %45 = vector.load %arg15[%c0_16, %c0_17, %c0_18] : memref<2x4x32xf32, #tpu.memory_space<vmem>>, vector<1x4x32xf32>
    %46 = vector.shape_cast %45 : vector<1x4x32xf32> to vector<4x32xf32>
    %47 = vector.shape_cast %44 : vector<4x32xf32> to vector<1x4x32xf32>
    tpu.vector_store %arg15[%c0_16, %c0_17, %c0_18], %47 {strides = array<i32>} : memref<2x4x32xf32, #tpu.memory_space<vmem>>, vector<1x4x32xf32>,
    %c0_19 = arith.constant 0 : index
    %c0_20 = arith.constant 0 : index
    %c0_21 = arith.constant 0 : index
    %48 = vector.load %arg16[%c0_19, %c0_20, %c0_21] : memref<2x4x32xf32, #tpu.memory_space<vmem>>, vector<1x4x32xf32>
    %49 = vector.shape_cast %48 : vector<1x4x32xf32> to vector<4x32xf32>
    %50 = vector.shape_cast %42 : vector<4x32xf32> to vector<1x4x32xf32>
    tpu.vector_store %arg16[%c0_19, %c0_20, %c0_21], %50 {strides = array<i32>} : memref<2x4x32xf32, #tpu.memory_space<vmem>>, vector<1x4x32xf32>,
    %c1_22 = arith.constant 1 : index
    %c0_23 = arith.constant 0 : index
    %c0_24 = arith.constant 0 : index
    %51 = vector.load %arg15[%c1_22, %c0_23, %c0_24] : memref<2x4x32xf32, #tpu.memory_space<vmem>>, vector<1x4x32xf32>
    %52 = vector.shape_cast %51 : vector<1x4x32xf32> to vector<4x32xf32>
    %c1_25 = arith.constant 1 : index
    %c0_26 = arith.constant 0 : index
    %c0_27 = arith.constant 0 : index
    %53 = vector.load %arg16[%c1_25, %c0_26, %c0_27] : memref<2x4x32xf32, #tpu.memory_space<vmem>>, vector<1x4x32xf32>
    %54 = vector.shape_cast %53 : vector<1x4x32xf32> to vector<4x32xf32>
    %c0_28 = arith.constant 0 : index
    %c0_29 = arith.constant 0 : index
    %55 = vector.load %arg7[%c0_28, %c0_29] : memref<32x128xf32, #tpu.memory_space<vmem>>, vector<32x128xf32>
    %cst_30 = arith.constant dense<0.000000e+00> : vector<4x128xf32>
    %56 = tpu.matmul %44, %55, %cst_30 {dimension_numbers = #tpu.dot_dimension_numbers<[1], [0], [0], [1], [0, 0, 1, 1], [], []>} : vector<4x32xf32>, vector<32x128xf32>, vector<4x128xf32> -> vector<4x128xf32>
    %c0_31 = arith.constant 0 : index
    %c0_32 = arith.constant 0 : index
    %57 = vector.load %arg8[%c0_31, %c0_32] : memref<32x128xf32, #tpu.memory_space<vmem>>, vector<32x128xf32>
    %cst_33 = arith.constant dense<0.000000e+00> : vector<4x128xf32>
    %58 = tpu.matmul %52, %57, %cst_33 {dimension_numbers = #tpu.dot_dimension_numbers<[1], [0], [0], [1], [0, 0, 1, 1], [], []>} : vector<4x32xf32>, vector<32x128xf32>, vector<4x128xf32> -> vector<4x128xf32>
    %59 = arith.addf %56, %58 : vector<4x128xf32>
    %c0_34 = arith.constant 0 : index
    %c0_35 = arith.constant 0 : index
    %60 = vector.load %arg9[%c0_34, %c0_35] : memref<1x128xf32, #tpu.memory_space<vmem>>, vector<1x128xf32>
    %61 = vector.broadcast %60 : vector<1x128xf32> to vector<4x128xf32>
    %62 = arith.addf %59, %61 : vector<4x128xf32>
    %63 = arith.negf %62 : vector<4x128xf32>
    %64 = math.exp %63 : vector<4x128xf32>
    %cst_36 = arith.constant 1.000000e+00 : f32
    %65 = vector.broadcast %cst_36 : f32 to vector<4x128xf32>
    %66 = arith.addf %65, %64 : vector<4x128xf32>
    %67 = arith.divf %65, %66 : vector<4x128xf32>
    %68 = math.tanh %62 : vector<4x128xf32>
    %69 = vector.extract_strided_slice %67 {offsets = [0, 0], sizes = [4, 32], strides = [1, 1]} : vector<4x128xf32> to vector<4x32xf32>
    %70 = vector.extract_strided_slice %67 {offsets = [0, 32], sizes = [4, 32], strides = [1, 1]} : vector<4x128xf32> to vector<4x32xf32>
    %71 = vector.extract_strided_slice %68 {offsets = [0, 64], sizes = [4, 32], strides = [1, 1]} : vector<4x128xf32> to vector<4x32xf32>
    %72 = vector.extract_strided_slice %67 {offsets = [0, 96], sizes = [4, 32], strides = [1, 1]} : vector<4x128xf32> to vector<4x32xf32>
    %73 = arith.mulf %70, %54 : vector<4x32xf32>
    %74 = arith.mulf %69, %71 : vector<4x32xf32>
    %75 = arith.addf %73, %74 : vector<4x32xf32>
    %76 = math.tanh %75 : vector<4x32xf32>
    %77 = arith.mulf %72, %76 : vector<4x32xf32>
    %c1_37 = arith.constant 1 : index
    %c0_38 = arith.constant 0 : index
    %c0_39 = arith.constant 0 : index
    %78 = vector.load %arg15[%c1_37, %c0_38, %c0_39] : memref<2x4x32xf32, #tpu.memory_space<vmem>>, vector<1x4x32xf32>
    %79 = vector.shape_cast %78 : vector<1x4x32xf32> to vector<4x32xf32>
    %80 = vector.shape_cast %77 : vector<4x32xf32> to vector<1x4x32xf32>
    tpu.vector_store %arg15[%c1_37, %c0_38, %c0_39], %80 {strides = array<i32>} : memref<2x4x32xf32, #tpu.memory_space<vmem>>, vector<1x4x32xf32>,
    %c1_40 = arith.constant 1 : index
    %c0_41 = arith.constant 0 : index
    %c0_42 = arith.constant 0 : index
    %81 = vector.load %arg16[%c1_40, %c0_41, %c0_42] : memref<2x4x32xf32, #tpu.memory_space<vmem>>, vector<1x4x32xf32>
    %82 = vector.shape_cast %81 : vector<1x4x32xf32> to vector<4x32xf32>
    %83 = vector.shape_cast %75 : vector<4x32xf32> to vector<1x4x32xf32>
    tpu.vector_store %arg16[%c1_40, %c0_41, %c0_42], %83 {strides = array<i32>} : memref<2x4x32xf32, #tpu.memory_space<vmem>>, vector<1x4x32xf32>,
    %c0_43 = arith.constant 0 : index
    %c0_44 = arith.constant 0 : index
    %84 = vector.load %arg10[%c0_43, %c0_44] : memref<32x128xf32, #tpu.memory_space<vmem>>, vector<32x128xf32>
    %cst_45 = arith.constant dense<0.000000e+00> : vector<4x128xf32>
    %85 = tpu.matmul %77, %84, %cst_45 {dimension_numbers = #tpu.dot_dimension_numbers<[1], [0], [0], [1], [0, 0, 1, 1], [], []>} : vector<4x32xf32>, vector<32x128xf32>, vector<4x128xf32> -> vector<4x128xf32>
    %c0_46 = arith.constant 0 : index
    %c0_47 = arith.constant 0 : index
    %86 = vector.load %arg11[%c0_46, %c0_47] : memref<1x128xf32, #tpu.memory_space<vmem>>, vector<1x128xf32>
    %87 = vector.broadcast %86 : vector<1x128xf32> to vector<4x128xf32>
    %88 = arith.addf %85, %87 : vector<4x128xf32>
    %c0_48 = arith.constant 0 : index
    %c0_49 = arith.constant 0 : index
    %c0_50 = arith.constant 0 : index
    %89 = vector.load %arg12[%c0_48, %c0_49, %c0_50] : memref<1x4x128xf32, #tpu.memory_space<vmem>>, vector<1x4x128xf32>
    %90 = vector.shape_cast %89 : vector<1x4x128xf32> to vector<4x128xf32>
    %91 = vector.shape_cast %88 : vector<4x128xf32> to vector<1x4x128xf32>
    tpu.vector_store %arg12[%c0_48, %c0_49, %c0_50], %91 {strides = array<i32>} : memref<1x4x128xf32, #tpu.memory_space<vmem>>, vector<1x4x128xf32>,
    %c7_i32 = arith.constant 7 : i32
    %92 = arith.cmpi eq, %arg0, %c7_i32 : i32
    %93 = arith.extui %92 : i1 to i32
    %c0_i32_51 = arith.constant 0 : i32
    %94 = arith.cmpi ne, %93, %c0_i32_51 : i32
    scf.if %94 {
      %c0_52 = arith.constant 0 : index
      %c0_53 = arith.constant 0 : index
      %c0_54 = arith.constant 0 : index
      %95 = vector.load %arg15[%c0_52, %c0_53, %c0_54] : memref<2x4x32xf32, #tpu.memory_space<vmem>>, vector<2x4x32xf32>
      %c0_55 = arith.constant 0 : index
      %c0_56 = arith.constant 0 : index
      %c0_57 = arith.constant 0 : index
      %96 = vector.load %arg13[%c0_55, %c0_56, %c0_57] : memref<2x4x32xf32, #tpu.memory_space<vmem>>, vector<2x4x32xf32>
      tpu.vector_store %arg13[%c0_55, %c0_56, %c0_57], %95 {strides = array<i32>} : memref<2x4x32xf32, #tpu.memory_space<vmem>>, vector<2x4x32xf32>,
      %c0_58 = arith.constant 0 : index
      %c0_59 = arith.constant 0 : index
      %c0_60 = arith.constant 0 : index
      %97 = vector.load %arg16[%c0_58, %c0_59, %c0_60] : memref<2x4x32xf32, #tpu.memory_space<vmem>>, vector<2x4x32xf32>
      %c0_61 = arith.constant 0 : index
      %c0_62 = arith.constant 0 : index
      %c0_63 = arith.constant 0 : index
      %98 = vector.load %arg14[%c0_61, %c0_62, %c0_63] : memref<2x4x32xf32, #tpu.memory_space<vmem>>, vector<2x4x32xf32>
      tpu.vector_store %arg14[%c0_61, %c0_62, %c0_63], %97 {strides = array<i32>} : memref<2x4x32xf32, #tpu.memory_space<vmem>>, vector<2x4x32xf32>,
    } else {
    }
    return
  }
  func.func @transform_0(%arg0: i32, %arg1: memref<8x4xi32, #tpu.memory_space<smem>>) -> (i32, i32, i32) {
    %c0_i32 = arith.constant 0 : i32
    %c0_i32_0 = arith.constant 0 : i32
    %c0_i32_1 = arith.constant 0 : i32
    %c0_i32_2 = arith.constant 0 : i32
    return %c0_i32, %c0_i32_0, %c0_i32_1 : i32, i32, i32
  }
  func.func @transform_1(%arg0: i32, %arg1: memref<8x4xi32, #tpu.memory_space<smem>>) -> (i32, i32, i32) {
    %c0_i32 = arith.constant 0 : i32
    %c0_i32_0 = arith.constant 0 : i32
    %c0_i32_1 = arith.constant 0 : i32
    %c0_i32_2 = arith.constant 0 : i32
    return %c0_i32, %c0_i32_0, %c0_i32_1 : i32, i32, i32
  }
  func.func @transform_2(%arg0: i32, %arg1: memref<8x4xi32, #tpu.memory_space<smem>>) -> (i32, i32) {
    %c0_i32 = arith.constant 0 : i32
    %c0_i32_0 = arith.constant 0 : i32
    %c0_i32_1 = arith.constant 0 : i32
    return %c0_i32, %c0_i32_0 : i32, i32
  }
  func.func @transform_3(%arg0: i32, %arg1: memref<8x4xi32, #tpu.memory_space<smem>>) -> (i32, i32) {
    %c0_i32 = arith.constant 0 : i32
    %c0_i32_0 = arith.constant 0 : i32
    %c0_i32_1 = arith.constant 0 : i32
    return %c0_i32, %c0_i32_0 : i32, i32
  }
  func.func @transform_4(%arg0: i32, %arg1: memref<8x4xi32, #tpu.memory_space<smem>>) -> (i32, i32) {
    %c0_i32 = arith.constant 0 : i32
    %c0_i32_0 = arith.constant 0 : i32
    %c0_i32_1 = arith.constant 0 : i32
    return %c0_i32, %c0_i32_0 : i32, i32
  }
  func.func @transform_5(%arg0: i32, %arg1: memref<8x4xi32, #tpu.memory_space<smem>>) -> (i32, i32) {
    %c0_i32 = arith.constant 0 : i32
    %c0_i32_0 = arith.constant 0 : i32
    %c0_i32_1 = arith.constant 0 : i32
    return %c0_i32, %c0_i32_0 : i32, i32
  }
  func.func @transform_6(%arg0: i32, %arg1: memref<8x4xi32, #tpu.memory_space<smem>>) -> (i32, i32) {
    %c0_i32 = arith.constant 0 : i32
    %c0_i32_0 = arith.constant 0 : i32
    %c0_i32_1 = arith.constant 0 : i32
    return %c0_i32, %c0_i32_0 : i32, i32
  }
  func.func @transform_7(%arg0: i32, %arg1: memref<8x4xi32, #tpu.memory_space<smem>>) -> (i32, i32) {
    %c0_i32 = arith.constant 0 : i32
    %c0_i32_0 = arith.constant 0 : i32
    %c0_i32_1 = arith.constant 0 : i32
    return %c0_i32, %c0_i32_0 : i32, i32
  }
  func.func @transform_8(%arg0: i32, %arg1: memref<8x4xi32, #tpu.memory_space<smem>>) -> (i32, i32) {
    %c0_i32 = arith.constant 0 : i32
    %c0_i32_0 = arith.constant 0 : i32
    %c0_i32_1 = arith.constant 0 : i32
    return %c0_i32, %c0_i32_0 : i32, i32
  }
  func.func @transform_9(%arg0: i32, %arg1: memref<8x4xi32, #tpu.memory_space<smem>>) -> (i32, i32) {
    %c0_i32 = arith.constant 0 : i32
    %c0_i32_0 = arith.constant 0 : i32
    %c0_i32_1 = arith.constant 0 : i32
    return %c0_i32, %c0_i32_0 : i32, i32
  }
  func.func @transform_10(%arg0: i32, %arg1: memref<8x4xi32, #tpu.memory_space<smem>>) -> (i32, i32, i32) {
    %c0_i32 = arith.constant 0 : i32
    %c0_i32_0 = arith.constant 0 : i32
    %c0_i32_1 = arith.constant 0 : i32
    return %arg0, %c0_i32, %c0_i32_0 : i32, i32, i32
  }
  func.func @transform_11(%arg0: i32, %arg1: memref<8x4xi32, #tpu.memory_space<smem>>) -> (i32, i32, i32) {
    %c0_i32 = arith.constant 0 : i32
    %c0_i32_0 = arith.constant 0 : i32
    %c0_i32_1 = arith.constant 0 : i32
    %c0_i32_2 = arith.constant 0 : i32
    return %c0_i32, %c0_i32_0, %c0_i32_1 : i32, i32, i32
  }
  func.func @transform_12(%arg0: i32, %arg1: memref<8x4xi32, #tpu.memory_space<smem>>) -> (i32, i32, i32) {
    %c0_i32 = arith.constant 0 : i32
    %c0_i32_0 = arith.constant 0 : i32
    %c0_i32_1 = arith.constant 0 : i32
    %c0_i32_2 = arith.constant 0 : i32
    return %c0_i32, %c0_i32_0, %c0_i32_1 : i32, i32, i32
  }
}

</mosaic_0001>

<llo_original>
// kernel: tpu_custom_call.1
$region0: #{tpu_custom_call.1}
  #allocation0 [shape = 'u32[]', space=smem, size = 0x4, offset = 0x4, fixed_abs, tag = 'smem constant byte address 0x4 - core index']
  #allocation1 [shape = 'u32[72,128]{1,0:T(1,128)}', space=vmem, size = 0x9000, scoped, tag = 'internal scratch']
  #allocation2 [shape = 'f32[2,4,32]{2,1,0:T(4,128)}', space=vmem, size = 0x1000, scoped, tag = 'scratch operand']
  #allocation3 [shape = 'f32[2,4,32]{2,1,0:T(4,128)}', space=vmem, size = 0x1000, scoped, tag = 'scratch operand']
  #allocation4 [shape = 's32[1]{0}', space=sflag, size = 0x4, scoped, tag = 'scoped memory for tpu_custom_call.1']
  #allocation5 [shape = 'u8[4096]{0}', space=smem, size = 0x1000, scoped, tag = 'prefetched SMEM operand 0']
  %s0 = inlined_call_operand.vmem [shape: s32[8,4], index: 0, kind: input, shape index: {}]
  %s1 = inlined_call_operand.vmem [shape: f32[2,4,32], index: 1, kind: input, shape index: {}]
  %s2 = inlined_call_operand.hbm [shape: f32[2,4,32], index: 2, kind: input, shape index: {}]
  %s3 = inlined_call_operand.hbm [shape: f32[16,128], index: 3, kind: input, shape index: {}]
  %s4 = inlined_call_operand.hbm [shape: f32[32,128], index: 4, kind: input, shape index: {}]
  %s5 = inlined_call_operand.vmem [shape: f32[1,128], index: 5, kind: input, shape index: {}]
  %s6 = inlined_call_operand.hbm [shape: f32[32,128], index: 6, kind: input, shape index: {}]
  %s7 = inlined_call_operand.hbm [shape: f32[32,128], index: 7, kind: input, shape index: {}]
  %s8 = inlined_call_operand.vmem [shape: f32[1,128], index: 8, kind: input, shape index: {}]
  %s9 = inlined_call_operand.hbm [shape: f32[32,128], index: 9, kind: input, shape index: {}]
  %s10 = inlined_call_operand.vmem [shape: f32[1,128], index: 10, kind: input, shape index: {}]
  %s11 = inlined_call_operand.hbm [shape: f32[8,4,128], index: 11, kind: output, shape index: {0}]
  %s12 = inlined_call_operand.hbm [shape: f32[2,4,32], index: 12, kind: output, shape index: {1}]
  %s13 = inlined_call_operand.hbm [shape: f32[2,4,32], index: 13, kind: output, shape index: {2}]
  %14 = xla_tuple %s11, %s12, %s13
  %s15 = sld [smem:[#allocation0]]
  $region121: #{tpu_custom_call.1} parent=0
    _
  %s17 = ssub.s32 1, %s15
  %s18 = scalar_select 0, %s17, %s15
  %s20 = sshll.u32 %s0, 4
  %s21 = int_to_ptr.vmem [resolvable:$true] %s20
  %23 = dma.vmem_to_smem %s21, 128, [#allocation5], [#allocation4]
  %25 = dma.done [#allocation4], 128
  %26 = sfence
  $region1: #{tpu_custom_call.1} parent=0
    #allocation6 [shape = 'u8[4096]{0}', space=vmem, size = 0x1000, scoped, tag = 'input window, operand 2, single buffered']
    #allocation7 [shape = 's32[2]{0}', space=sflag, size = 0x8, scoped, tag = 'scoped memory for tpu_custom_call.1']
    #allocation8 [shape = 's32[2]{0}', space=sflag, size = 0x8, scoped, tag = 'scoped memory for tpu_custom_call.1']
    #allocation9 [shape = 'u8[8192]{0}', space=vmem, size = 0x2000, scoped, tag = 'input window, operand 3, single buffered']
    #allocation10 [shape = 's32[1]{0}', space=sflag, size = 0x4, scoped, tag = 'scoped memory for tpu_custom_call.1']
    #allocation11 [shape = 'u8[16384]{0}', space=vmem, size = 0x4000, scoped, tag = 'input window, operand 4, single buffered']
    #allocation12 [shape = 'u8[16384]{0}', space=vmem, size = 0x4000, scoped, tag = 'input window, operand 6, single buffered']
    #allocation13 [shape = 's32[1]{0}', space=sflag, size = 0x4, scoped, tag = 'scoped memory for tpu_custom_call.1']
    #allocation14 [shape = 'u8[16384]{0}', space=vmem, size = 0x4000, scoped, tag = 'input window, operand 7, single buffered']
    #allocation15 [shape = 'u8[16384]{0}', space=vmem, size = 0x4000, scoped, tag = 'input window, operand 9, single buffered']
    #allocation16 [shape = 's32[1]{0}', space=sflag, size = 0x4, scoped, tag = 'scoped memory for tpu_custom_call.1']
    #allocation17 [shape = 'u8[4096]{0}', space=vmem, size = 0x1000, scoped, tag = 'output window, operand 0']
    #allocation18 [shape = 'u8[4096]{0}', space=vmem, size = 0x1000, scoped, tag = 'output window, operand 1, single buffered']
    #allocation19 [shape = 's32[1]{0}', space=sflag, size = 0x4, scoped, tag = 'scoped memory for tpu_custom_call.1']
    #allocation20 [shape = 'u8[4096]{0}', space=vmem, size = 0x1000, scoped, tag = 'output window, operand 2, single buffered']
    %27 = vsyncpa [#allocation7], 0
    %28 = vsyncpa [#allocation10], 0
    %29 = vsyncpa [#allocation13], 0
    %30 = vsyncpa [#allocation16], 0
    %31 = vsyncpa [#allocation8], 0
    %s32 = scalar_lea.sflag [#allocation8], 1
    %33 = vsyncpa %s32, 0
    %34 = vsyncpa [#allocation19], 0
    loop: start=0, step=1, limit=10
    $region2: #{tpu_custom_call.1} parent=1 // loop_pre_header
      _
    $region3: #{tpu_custom_call.1} parent=1 // loop_header
      %s36 = sphi 0, %s40
      %p37 = scmp.ge.s32.totalorder %s36, 10
      %s44 = sphi 0, %s44
      %s46 = sphi 0, %s44
      %s47 = sphi 0, %s46
      %s61 = sphi 0, %s47
      %s65 = sphi 0, %s65
      %s67 = sphi 0, %s65
      %s68 = sphi 0, %s67
      %s82 = sphi 0, %s68
      %s86 = sphi 0, %s86
      %s88 = sphi 0, %s86
      %s89 = sphi 0, %s88
      %s103 = sphi 0, %s89
      %s107 = sphi 0, %s107
      %s109 = sphi 0, %s107
      %s110 = sphi 0, %s109
      %s124 = sphi 0, %s110
      %s128 = sphi 0, %s128
      %s130 = sphi 0, %s128
      %s131 = sphi 0, %s130
      %s145 = sphi 0, %s131
      %s149 = sphi 0, %s149
      %s151 = sphi 0, %s149
      %s152 = sphi 0, %s151
      %s166 = sphi 0, %s152
      %s170 = sphi 0, %s170
      %s172 = sphi 0, %s170
      %s173 = sphi 0, %s172
      %s187 = sphi 0, %s173
      %s191 = sphi 0, %s191
      %s193 = sphi 0, %s191
      %s194 = sphi 0, %s193
      %s208 = sphi 0, %s194
      %s212 = sphi 0, %s212
      %s214 = sphi 0, %s212
      %s215 = sphi 0, %s214
      %s229 = sphi 0, %s215
      %s233 = sphi 0, %s233
      %s235 = sphi 0, %s233
      %s236 = sphi 0, %s235
      %s250 = sphi 0, %s236
      %s256 = sphi 0, %s258
      %s259 = sphi 0, %s256
      %s260 = sphi 0, %s259
      %s276 = sphi 0, %s260
      %s280 = sphi 0, %s280
      %s282 = sphi 0, %s280
      %s283 = sphi 0, %s282
      %s297 = sphi 0, %s283
      %s301 = sphi 0, %s301
      %s303 = sphi 0, %s301
      %s304 = sphi 0, %s303
      %s318 = sphi 0, %s304
    $region4: #{tpu_custom_call.1} parent=1 // loop_header_branch
      %39 = sbr.rel (%p37) target = $region8
    $region5: #{tpu_custom_call.1} parent=1 // loop_body
      %s41 = ssub.s32 %s36, 1
      %s42 = ssub.s32 %s36, 2
      %s43 = sadd.s32 %s36, 1
      %s45 = sadd.s32 %s44, 1
      %p48 = scmp.eq.s32.totalorder %s36, 7
      %p49 = scmp.ne.s32.totalorder %s44, %s46
      %p50 = scmp.eq.s32.totalorder %s36, 0
      %p51 = por %p49, %p50
      %p52 = scmp.ne.s32.totalorder %s44, %s46
      %p53 = scmp.eq.s32.totalorder %s41, 7
      %p54 = por %p52, %p53
      %p55 = scmp.ne.s32.totalorder %s46, %s47
      %p56 = scmp.eq.s32.totalorder %s41, 0
      %p57 = por %p55, %p56
      %p58 = scmp.ne.s32.totalorder %s46, %s47
      %p59 = scmp.eq.s32.totalorder %s42, 7
      %p60 = por %p58, %p59
      %p62 = scmp.ne.s32.totalorder %s47, %s61
      %p63 = scmp.eq.s32.totalorder %s42, 0
      %p64 = por %p62, %p63
      %s66 = sadd.s32 %s65, 1
      %p69 = scmp.eq.s32.totalorder %s36, 7
      %p70 = scmp.ne.s32.totalorder %s65, %s67
      %p71 = scmp.eq.s32.totalorder %s36, 0
      %p72 = por %p70, %p71
      %p73 = scmp.ne.s32.totalorder %s65, %s67
      %p74 = scmp.eq.s32.totalorder %s41, 7
      %p75 = por %p73, %p74
      %p76 = scmp.ne.s32.totalorder %s67, %s68
      %p77 = scmp.eq.s32.totalorder %s41, 0
      %p78 = por %p76, %p77
      %p79 = scmp.ne.s32.totalorder %s67, %s68
      %p80 = scmp.eq.s32.totalorder %s42, 7
      %p81 = por %p79, %p80
      %p83 = scmp.ne.s32.totalorder %s68, %s82
      %p84 = scmp.eq.s32.totalorder %s42, 0
      %p85 = por %p83, %p84
      %s87 = sadd.s32 %s86, 1
      %p90 = scmp.eq.s32.totalorder %s36, 7
      %p91 = scmp.ne.s32.totalorder %s86, %s88
      %p92 = scmp.eq.s32.totalorder %s36, 0
      %p93 = por %p91, %p92
      %p94 = scmp.ne.s32.totalorder %s86, %s88
      %p95 = scmp.eq.s32.totalorder %s41, 7
      %p96 = por %p94, %p95
      %p97 = scmp.ne.s32.totalorder %s88, %s89
      %p98 = scmp.eq.s32.totalorder %s41, 0
      %p99 = por %p97, %p98
      %p100 = scmp.ne.s32.totalorder %s88, %s89
      %p101 = scmp.eq.s32.totalorder %s42, 7
      %p102 = por %p100, %p101
      %p104 = scmp.ne.s32.totalorder %s89, %s103
      %p105 = scmp.eq.s32.totalorder %s42, 0
      %p106 = por %p104, %p105
      %s108 = sadd.s32 %s107, 1
      %p111 = scmp.eq.s32.totalorder %s36, 7
      %p112 = scmp.ne.s32.totalorder %s107, %s109
      %p113 = scmp.eq.s32.totalorder %s36, 0
      %p114 = por %p112, %p113
      %p115 = scmp.ne.s32.totalorder %s107, %s109
      %p116 = scmp.eq.s32.totalorder %s41, 7
      %p117 = por %p115, %p116
      %p118 = scmp.ne.s32.totalorder %s109, %s110
      %p119 = scmp.eq.s32.totalorder %s41, 0
      %p120 = por %p118, %p119
      %p121 = scmp.ne.s32.totalorder %s109, %s110
      %p122 = scmp.eq.s32.totalorder %s42, 7
      %p123 = por %p121, %p122
      %p125 = scmp.ne.s32.totalorder %s110, %s124
      %p126 = scmp.eq.s32.totalorder %s42, 0
      %p127 = por %p125, %p126
      %s129 = sadd.s32 %s128, 1
      %p132 = scmp.eq.s32.totalorder %s36, 7
      %p133 = scmp.ne.s32.totalorder %s128, %s130
      %p134 = scmp.eq.s32.totalorder %s36, 0
      %p135 = por %p133, %p134
      %p136 = scmp.ne.s32.totalorder %s128, %s130
      %p137 = scmp.eq.s32.totalorder %s41, 7
      %p138 = por %p136, %p137
      %p139 = scmp.ne.s32.totalorder %s130, %s131
      %p140 = scmp.eq.s32.totalorder %s41, 0
      %p141 = por %p139, %p140
      %p142 = scmp.ne.s32.totalorder %s130, %s131
      %p143 = scmp.eq.s32.totalorder %s42, 7
      %p144 = por %p142, %p143
      %p146 = scmp.ne.s32.totalorder %s131, %s145
      %p147 = scmp.eq.s32.totalorder %s42, 0
      %p148 = por %p146, %p147
      %s150 = sadd.s32 %s149, 1
      %p153 = scmp.eq.s32.totalorder %s36, 7
      %p154 = scmp.ne.s32.totalorder %s149, %s151
      %p155 = scmp.eq.s32.totalorder %s36, 0
      %p156 = por %p154, %p155
      %p157 = scmp.ne.s32.totalorder %s149, %s151
      %p158 = scmp.eq.s32.totalorder %s41, 7
      %p159 = por %p157, %p158
      %p160 = scmp.ne.s32.totalorder %s151, %s152
      %p161 = scmp.eq.s32.totalorder %s41, 0
      %p162 = por %p160, %p161
      %p163 = scmp.ne.s32.totalorder %s151, %s152
      %p164 = scmp.eq.s32.totalorder %s42, 7
      %p165 = por %p163, %p164
      %p167 = scmp.ne.s32.totalorder %s152, %s166
      %p168 = scmp.eq.s32.totalorder %s42, 0
      %p169 = por %p167, %p168
      %s171 = sadd.s32 %s170, 1
      %p174 = scmp.eq.s32.totalorder %s36, 7
      %p175 = scmp.ne.s32.totalorder %s170, %s172
      %p176 = scmp.eq.s32.totalorder %s36, 0
      %p177 = por %p175, %p176
      %p178 = scmp.ne.s32.totalorder %s170, %s172
      %p179 = scmp.eq.s32.totalorder %s41, 7
      %p180 = por %p178, %p179
      %p181 = scmp.ne.s32.totalorder %s172, %s173
      %p182 = scmp.eq.s32.totalorder %s41, 0
      %p183 = por %p181, %p182
      %p184 = scmp.ne.s32.totalorder %s172, %s173
      %p185 = scmp.eq.s32.totalorder %s42, 7
      %p186 = por %p184, %p185
      %p188 = scmp.ne.s32.totalorder %s173, %s187
      %p189 = scmp.eq.s32.totalorder %s42, 0
      %p190 = por %p188, %p189
      %s192 = sadd.s32 %s191, 1
      %p195 = scmp.eq.s32.totalorder %s36, 7
      %p196 = scmp.ne.s32.totalorder %s191, %s193
      %p197 = scmp.eq.s32.totalorder %s36, 0
      %p198 = por %p196, %p197
      %p199 = scmp.ne.s32.totalorder %s191, %s193
      %p200 = scmp.eq.s32.totalorder %s41, 7
      %p201 = por %p199, %p200
      %p202 = scmp.ne.s32.totalorder %s193, %s194
      %p203 = scmp.eq.s32.totalorder %s41, 0
      %p204 = por %p202, %p203
      %p205 = scmp.ne.s32.totalorder %s193, %s194
      %p206 = scmp.eq.s32.totalorder %s42, 7
      %p207 = por %p205, %p206
      %p209 = scmp.ne.s32.totalorder %s194, %s208
      %p210 = scmp.eq.s32.totalorder %s42, 0
      %p211 = por %p209, %p210
      %s213 = sadd.s32 %s212, 1
      %p216 = scmp.eq.s32.totalorder %s36, 7
      %p217 = scmp.ne.s32.totalorder %s212, %s214
      %p218 = scmp.eq.s32.totalorder %s36, 0
      %p219 = por %p217, %p218
      %p220 = scmp.ne.s32.totalorder %s212, %s214
      %p221 = scmp.eq.s32.totalorder %s41, 7
      %p222 = por %p220, %p221
      %p223 = scmp.ne.s32.totalorder %s214, %s215
      %p224 = scmp.eq.s32.totalorder %s41, 0
      %p225 = por %p223, %p224
      %p226 = scmp.ne.s32.totalorder %s214, %s215
      %p227 = scmp.eq.s32.totalorder %s42, 7
      %p228 = por %p226, %p227
      %p230 = scmp.ne.s32.totalorder %s215, %s229
      %p231 = scmp.eq.s32.totalorder %s42, 0
      %p232 = por %p230, %p231
      %s234 = sadd.s32 %s233, 1
      %p237 = scmp.eq.s32.totalorder %s36, 7
      %p238 = scmp.ne.s32.totalorder %s233, %s235
      %p239 = scmp.eq.s32.totalorder %s36, 0
      %p240 = por %p238, %p239
      %p241 = scmp.ne.s32.totalorder %s233, %s235
      %p242 = scmp.eq.s32.totalorder %s41, 7
      %p243 = por %p241, %p242
      %p244 = scmp.ne.s32.totalorder %s235, %s236
      %p245 = scmp.eq.s32.totalorder %s41, 0
      %p246 = por %p244, %p245
      %p247 = scmp.ne.s32.totalorder %s235, %s236
      %p248 = scmp.eq.s32.totalorder %s42, 7
      %p249 = por %p247, %p248
      %p251 = scmp.ne.s32.totalorder %s236, %s250
      %p252 = scmp.eq.s32.totalorder %s42, 0
      %p253 = por %p251, %p252
      %s254 = ssub.s32 %s36, %s43
      %p255 = scmp.eq.s32.totalorder %s254, 0
      %s257 = sadd.s32 %s256, 1
      %s258 = scalar_select %p255, %s256, %s257
      %p261 = pneg %p255
      %p262 = scmp.eq.s32.totalorder %s36, 7
      %p263 = por %p261, %p262
      %p264 = scmp.ne.s32.totalorder %s256, %s259
      %p265 = scmp.eq.s32.totalorder %s36, 0
      %p266 = por %p264, %p265
      %p267 = scmp.ne.s32.totalorder %s256, %s259
      %p268 = scmp.eq.s32.totalorder %s41, 7
      %p269 = por %p267, %p268
      %p270 = scmp.ne.s32.totalorder %s259, %s260
      %p271 = scmp.eq.s32.totalorder %s41, 0
      %p272 = por %p270, %p271
      %p273 = scmp.ne.s32.totalorder %s259, %s260
      %p274 = scmp.eq.s32.totalorder %s42, 7
      %p275 = por %p273, %p274
      %p277 = scmp.ne.s32.totalorder %s260, %s276
      %p278 = scmp.eq.s32.totalorder %s42, 0
      %p279 = por %p277, %p278
      %s281 = sadd.s32 %s280, 1
      %p284 = scmp.eq.s32.totalorder %s36, 7
      %p285 = scmp.ne.s32.totalorder %s280, %s282
      %p286 = scmp.eq.s32.totalorder %s36, 0
      %p287 = por %p285, %p286
      %p288 = scmp.ne.s32.totalorder %s280, %s282
      %p289 = scmp.eq.s32.totalorder %s41, 7
      %p290 = por %p288, %p289
      %p291 = scmp.ne.s32.totalorder %s282, %s283
      %p292 = scmp.eq.s32.totalorder %s41, 0
      %p293 = por %p291, %p292
      %p294 = scmp.ne.s32.totalorder %s282, %s283
      %p295 = scmp.eq.s32.totalorder %s42, 7
      %p296 = por %p294, %p295
      %p298 = scmp.ne.s32.totalorder %s283, %s297
      %p299 = scmp.eq.s32.totalorder %s42, 0
      %p300 = por %p298, %p299
      %s302 = sadd.s32 %s301, 1
      %p305 = scmp.eq.s32.totalorder %s36, 7
      %p306 = scmp.ne.s32.totalorder %s301, %s303
      %p307 = scmp.eq.s32.totalorder %s36, 0
      %p308 = por %p306, %p307
      %p309 = scmp.ne.s32.totalorder %s301, %s303
      %p310 = scmp.eq.s32.totalorder %s41, 7
      %p311 = por %p309, %p310
      %p312 = scmp.ne.s32.totalorder %s303, %s304
      %p313 = scmp.eq.s32.totalorder %s41, 0
      %p314 = por %p312, %p313
      %p315 = scmp.ne.s32.totalorder %s303, %s304
      %p316 = scmp.eq.s32.totalorder %s42, 7
      %p317 = por %p315, %p316
      %p319 = scmp.ne.s32.totalorder %s304, %s318
      %p320 = scmp.eq.s32.totalorder %s42, 0
      %p321 = por %p319, %p320
      %p322 = scmp.le.s32.totalorder 1, %s36
      %p323 = scmp.lt.s32.totalorder %s36, 9
      %p324 = pnand %p322, %p323
      %p325 = pneg %p324
      // Predicated region
      $region9: #{tpu_custom_call.1} parent=5 // pred_check
        _
      $region10: #{tpu_custom_call.1} parent=5 // pred_check_branch
        %327 = sbr.rel (%p324) target = $region12
      $region11: #{tpu_custom_call.1} parent=5 // pred_region
        %s328 = ssub.s32 %s36, 1
        // Predicated region
        $region13: #{tpu_custom_call.1} parent=11 // pred_check
          %p329 = pneg %p57
        $region14: #{tpu_custom_call.1} parent=11 // pred_check_branch
          %331 = sbr.rel (%p329) target = $region16
        $region15: #{tpu_custom_call.1} parent=11 // pred_region
          _
        $region16: #{tpu_custom_call.1} parent=11 // pred_fallthru
          _
        // Predicated region
        $region17: #{tpu_custom_call.1} parent=11 // pred_check
          %p332 = pneg %p78
        $region18: #{tpu_custom_call.1} parent=11 // pred_check_branch
          %334 = sbr.rel (%p332) target = $region20
        $region19: #{tpu_custom_call.1} parent=11 // pred_region
          %336 = vsyncadd [#allocation7], 0
          %s337 = sshll.u32 %s2, 4
          %s338 = int_to_ptr.hbm [resolvable:$true] %s337
          %s339 = sshll.u32 [#allocation6], 4
          %s340 = int_to_ptr.vmem [resolvable:$true] %s339
          %345 = dma.hbm_to_vmem [thread:$0]  %s338, 128, %s340, [#allocation7], 64, 64, 4
        $region20: #{tpu_custom_call.1} parent=11 // pred_fallthru
          _
        // Predicated region
        $region21: #{tpu_custom_call.1} parent=11 // pred_check
          %p346 = pneg %p99
        $region22: #{tpu_custom_call.1} parent=11 // pred_check_branch
          %348 = sbr.rel (%p346) target = $region24
        $region23: #{tpu_custom_call.1} parent=11 // pred_region
          %350 = vsyncadd [#allocation10], 0
          %s351 = sshll.u32 %s3, 4
          %s352 = int_to_ptr.hbm [resolvable:$true] %s351
          %s353 = sshll.u32 [#allocation9], 4
          %s354 = int_to_ptr.vmem [resolvable:$true] %s353
          %359 = dma.hbm_to_vmem [thread:$0]  %s352, 256, %s354, [#allocation10], 128, 128, 8
        $region24: #{tpu_custom_call.1} parent=11 // pred_fallthru
          _
        // Predicated region
        $region25: #{tpu_custom_call.1} parent=11 // pred_check
          %p360 = pneg %p120
        $region26: #{tpu_custom_call.1} parent=11 // pred_check_branch
          %362 = sbr.rel (%p360) target = $region28
        $region27: #{tpu_custom_call.1} parent=11 // pred_region
          %364 = vsyncadd [#allocation10], 0
          %s365 = sshll.u32 %s4, 4
          %s366 = int_to_ptr.hbm [resolvable:$true] %s365
          %s367 = sshll.u32 [#allocation11], 4
          %s368 = int_to_ptr.vmem [resolvable:$true] %s367
          %373 = dma.hbm_to_vmem [thread:$0]  %s366, 512, %s368, [#allocation10], 128, 128, 8
        $region28: #{tpu_custom_call.1} parent=11 // pred_fallthru
          _
        // Predicated region
        $region29: #{tpu_custom_call.1} parent=11 // pred_check
          %p374 = pneg %p141
        $region30: #{tpu_custom_call.1} parent=11 // pred_check_branch
          %376 = sbr.rel (%p374) target = $region32
        $region31: #{tpu_custom_call.1} parent=11 // pred_region
          _
        $region32: #{tpu_custom_call.1} parent=11 // pred_fallthru
          _
        // Predicated region
        $region33: #{tpu_custom_call.1} parent=11 // pred_check
          %p377 = pneg %p162
        $region34: #{tpu_custom_call.1} parent=11 // pred_check_branch
          %379 = sbr.rel (%p377) target = $region36
        $region35: #{tpu_custom_call.1} parent=11 // pred_region
          %381 = vsyncadd [#allocation13], 0
          %s382 = sshll.u32 %s6, 4
          %s383 = int_to_ptr.hbm [resolvable:$true] %s382
          %s384 = sshll.u32 [#allocation12], 4
          %s385 = int_to_ptr.vmem [resolvable:$true] %s384
          %390 = dma.hbm_to_vmem [thread:$0]  %s383, 512, %s385, [#allocation13], 128, 128, 8
        $region36: #{tpu_custom_call.1} parent=11 // pred_fallthru
          _
        // Predicated region
        $region37: #{tpu_custom_call.1} parent=11 // pred_check
          %p391 = pneg %p183
        $region38: #{tpu_custom_call.1} parent=11 // pred_check_branch
          %393 = sbr.rel (%p391) target = $region40
        $region39: #{tpu_custom_call.1} parent=11 // pred_region
          %395 = vsyncadd [#allocation13], 0
          %s396 = sshll.u32 %s7, 4
          %s397 = int_to_ptr.hbm [resolvable:$true] %s396
          %s398 = sshll.u32 [#allocation14], 4
          %s399 = int_to_ptr.vmem [resolvable:$true] %s398
          %404 = dma.hbm_to_vmem [thread:$0]  %s397, 512, %s399, [#allocation13], 128, 128, 8
        $region40: #{tpu_custom_call.1} parent=11 // pred_fallthru
          _
        // Predicated region
        $region41: #{tpu_custom_call.1} parent=11 // pred_check
          %p405 = pneg %p204
        $region42: #{tpu_custom_call.1} parent=11 // pred_check_branch
          %407 = sbr.rel (%p405) target = $region44
        $region43: #{tpu_custom_call.1} parent=11 // pred_region
          _
        $region44: #{tpu_custom_call.1} parent=11 // pred_fallthru
          _
        // Predicated region
        $region45: #{tpu_custom_call.1} parent=11 // pred_check
          %p408 = pneg %p225
        $region46: #{tpu_custom_call.1} parent=11 // pred_check_branch
          %410 = sbr.rel (%p408) target = $region48
        $region47: #{tpu_custom_call.1} parent=11 // pred_region
          %412 = vsyncadd [#allocation16], 0
          %s413 = sshll.u32 %s9, 4
          %s414 = int_to_ptr.hbm [resolvable:$true] %s413
          %s415 = sshll.u32 [#allocation15], 4
          %s416 = int_to_ptr.vmem [resolvable:$true] %s415
          %421 = dma.hbm_to_vmem [thread:$0]  %s414, 512, %s416, [#allocation16], 128, 128, 8
        $region48: #{tpu_custom_call.1} parent=11 // pred_fallthru
          _
        // Predicated region
        $region49: #{tpu_custom_call.1} parent=11 // pred_check
          %p422 = pneg %p246
        $region50: #{tpu_custom_call.1} parent=11 // pred_check_branch
          %424 = sbr.rel (%p422) target = $region52
        $region51: #{tpu_custom_call.1} parent=11 // pred_region
          _
        $region52: #{tpu_custom_call.1} parent=11 // pred_fallthru
          _
      $region12: #{tpu_custom_call.1} parent=5 // pred_fallthru
        _
      %p425 = scmp.lt.s32.totalorder %s36, 8
      // Predicated region
      $region53: #{tpu_custom_call.1} parent=5 // pred_check
        %p426 = pneg %p425
      $region54: #{tpu_custom_call.1} parent=5 // pred_check_branch
        %428 = sbr.rel (%p426) target = $region56
      $region55: #{tpu_custom_call.1} parent=5 // pred_region
        _
      $region56: #{tpu_custom_call.1} parent=5 // pred_fallthru
        _
      %p429 = scmp.le.s32.totalorder 1, %s36
      %p430 = scmp.lt.s32.totalorder %s36, 9
      %p431 = pnand %p429, %p430
      %p432 = pneg %p431
      // Predicated region
      $region57: #{tpu_custom_call.1} parent=5 // pred_check
        _
      $region58: #{tpu_custom_call.1} parent=5 // pred_check_branch
        %434 = sbr.rel (%p431) target = $region60
      $region59: #{tpu_custom_call.1} parent=5 // pred_region
        %s435 = ssub.s32 %s36, 1
        // Predicated region
        $region61: #{tpu_custom_call.1} parent=59 // pred_check
          %p436 = pneg %p78
        $region62: #{tpu_custom_call.1} parent=59 // pred_check_branch
          %438 = sbr.rel (%p436) target = $region64
        $region63: #{tpu_custom_call.1} parent=59 // pred_region
          %440 = dma.done [#allocation7], 128
        $region64: #{tpu_custom_call.1} parent=59 // pred_fallthru
          _
        // Predicated region
        $region65: #{tpu_custom_call.1} parent=59 // pred_check
          %p441 = pneg %p99
        $region66: #{tpu_custom_call.1} parent=59 // pred_check_branch
          %443 = sbr.rel (%p441) target = $region68
        $region67: #{tpu_custom_call.1} parent=59 // pred_region
          %445 = dma.done [#allocation10], 256
        $region68: #{tpu_custom_call.1} parent=59 // pred_fallthru
          _
        // Predicated region
        $region69: #{tpu_custom_call.1} parent=59 // pred_check
          %p446 = pneg %p120
        $region70: #{tpu_custom_call.1} parent=59 // pred_check_branch
          %448 = sbr.rel (%p446) target = $region72
        $region71: #{tpu_custom_call.1} parent=59 // pred_region
          %450 = dma.done [#allocation10], 512
        $region72: #{tpu_custom_call.1} parent=59 // pred_fallthru
          _
        // Predicated region
        $region73: #{tpu_custom_call.1} parent=59 // pred_check
          %p451 = pneg %p162
        $region74: #{tpu_custom_call.1} parent=59 // pred_check_branch
          %453 = sbr.rel (%p451) target = $region76
        $region75: #{tpu_custom_call.1} parent=59 // pred_region
          %455 = dma.done [#allocation13], 512
        $region76: #{tpu_custom_call.1} parent=59 // pred_fallthru
          _
        // Predicated region
        $region77: #{tpu_custom_call.1} parent=59 // pred_check
          %p456 = pneg %p183
        $region78: #{tpu_custom_call.1} parent=59 // pred_check_branch
          %458 = sbr.rel (%p456) target = $region80
        $region79: #{tpu_custom_call.1} parent=59 // pred_region
          %460 = dma.done [#allocation13], 512
        $region80: #{tpu_custom_call.1} parent=59 // pred_fallthru
          _
        // Predicated region
        $region81: #{tpu_custom_call.1} parent=59 // pred_check
          %p461 = pneg %p225
        $region82: #{tpu_custom_call.1} parent=59 // pred_check_branch
          %463 = sbr.rel (%p461) target = $region84
        $region83: #{tpu_custom_call.1} parent=59 // pred_region
          %465 = dma.done [#allocation16], 512
        $region84: #{tpu_custom_call.1} parent=59 // pred_fallthru
          _
        %p466 = pneg %p57
        %p467 = pneg %p54
        %p468 = pneg %p78
        %p469 = pneg %p75
        %p470 = pneg %p99
        %p471 = pneg %p96
        %p472 = pneg %p120
        %p473 = pneg %p117
        %p474 = pneg %p141
        %p475 = pneg %p138
        %p476 = pneg %p162
        %p477 = pneg %p159
        %p478 = pneg %p183
        %p479 = pneg %p180
        %p480 = pneg %p204
        %p481 = pneg %p201
        %p482 = pneg %p225
        %p483 = pneg %p222
        %p484 = pneg %p246
        %p485 = pneg %p243
        %p486 = pneg %p272
        %p487 = pneg %p269
        %s488 = sand.u32 %s259, 1
        %s489 = scalar_lea.sflag [#allocation8], %s488
        %s490 = sand.u32 %s259, 1
        %s491 = smul.addr %s490, 4
        %s492 = scalar_lea.vmem [#allocation17], %s491
        %p493 = pneg %p293
        %p494 = pneg %p290
        %p495 = pneg %p314
        %p496 = pneg %p311
        %p497 = scmp.eq.s32.totalorder %s41, 0
        // Predicated region
        $region85: #{tpu_custom_call.1} parent=59 // pred_check
          %p498 = pneg %p497
        $region86: #{tpu_custom_call.1} parent=59 // pred_check_branch
          %500 = sbr.rel (%p498) target = $region88
        $region87: #{tpu_custom_call.1} parent=59 // pred_region
          %v501 = vld [vmem:[%s1] sm:$0xf]
          %v502 = vld [vmem:[%s1 + $0x4] sm:$0xf]
          %vm503 = vcmask 257024
          %504 = vst.msk [vmem:[#allocation2] sm:$0xf] %vm503, %v501
          %505 = vst.msk [vmem:[#allocation2 + $0x4] sm:$0xf] %vm503, %v502
          %v506 = vld [vmem:[#allocation6] sm:$0xf]
          %v507 = vld [vmem:[#allocation6 + $0x4] sm:$0xf]
          %508 = vst.msk [vmem:[#allocation3] sm:$0xf] %vm503, %v506
          %509 = vst.msk [vmem:[#allocation3 + $0x4] sm:$0xf] %vm503, %v507
        $region88: #{tpu_custom_call.1} parent=59 // pred_fallthru
          _
        %s510 = smul.u32 %s41, 128
        %s511 = sld [smem:[#allocation5 + %s510]]
        %s512 = scalar_lea.vmem [#allocation9], %s511
        %v513 = vld [vmem:[%s512] sm:$0x1]
        %s514 = sadd.s32 %s510, 1
        %s515 = sld [smem:[#allocation5 + %s514]]
        %s516 = scalar_lea.vmem [#allocation9], %s515
        %v517 = vld [vmem:[%s516] sm:$0x1]
        %s518 = sadd.s32 %s510, 2
        %s519 = sld [smem:[#allocation5 + %s518]]
        %s520 = scalar_lea.vmem [#allocation9], %s519
        %v521 = vld [vmem:[%s520] sm:$0x1]
        %s522 = sadd.s32 %s510, 3
        %s523 = sld [smem:[#allocation5 + %s522]]
        %s524 = scalar_lea.vmem [#allocation9], %s523
        %v525 = vld [vmem:[%s524] sm:$0x1]
        %v527 = vrot.slane %v517, 7
        %v530 = vrot.slane %v521, 6
        %v533 = vrot.slane %v525, 5
        %vm535 = vcmask 1040384
        %v536 = vsel %vm535, %v513, %v527
        %vm537 = vcmask 1041408
        %v538 = vsel %vm537, %v536, %v530
        %vm539 = vcmask 1042432
        %v540 = vsel %vm539, %v538, %v533
        %v541 = vld [vmem:[#allocation2] sm:$0xf]
        %v542 = vld [vmem:[#allocation3] sm:$0xf]
        %v543 = vld [vmem:[#allocation11] sm:$0xff]
        %v544 = vld [vmem:[#allocation11 + $0x8] sm:$0xff]
        %v545 = vld [vmem:[#allocation11 + $0x10] sm:$0xff]
        %v546 = vld [vmem:[#allocation11 + $0x18] sm:$0xff]
        %vm547 = vcmask 261120
        %v549 = vsel %vm547, %v541, 0
        %551 = vmatpush.msra.mxu0 0.0
        %552 = vmatpush.msra.mxu0 0.0
        %553 = vmatpush.msra.mxu0 0.0
        %554 = vmatpush.msra.mxu0 0.0
        %555 = vmatpush.msra.mxu0 0.0
        %556 = vmatpush.msra.mxu0 0.0
        %557 = vmatpush.msra.mxu0 0.0
        %558 = vmatpush.msra.mxu0 0.0
        %559 = vmatpush.msra.mxu0 0.0
        %560 = vmatpush.msra.mxu0 0.0
        %561 = vmatpush.msra.mxu0 0.0
        %562 = vmatpush.msra.mxu0 0.0
        %563 = vmatpush.msra.mxu0 %v546
        %564 = vmatpush.msra.mxu0 %v545
        %565 = vmatpush.msra.mxu0 %v544
        %566 = vmatpush.msra.mxu0 %v543
        %567 = vmatmul.f32.gmra.mxu0 %v549
        %v568 = vpop.f32.mrf.mxu0
        %v569 = vadd.f32 0.0, %v568
        %570 = vdwg.mxu0
        %v571 = vadd.f32 %v540, %v569
        %v572 = vld [vmem:[%s5] sm:$0x1]
        %v574 = vperm.slane %v572, 0
        %v576 = vadd.f32 %v571, %v574
        %v577 = vxor.u32 %v576, 2147483648
        %v578 = vmul.f32 %v577, 1.442695
        %v579 = vpow.pop %v578
        %v580 = vadd.f32 %v579, 1.0
        %v581 = vrcp.pop %v580
        %v582 = vmul.f32 %v580, %v581
        %v583 = vsub.f32 1.0, %v582
        %v584 = vmul.f32 %v581, %v583
        %v585 = vadd.f32 %v581, %v584
        %vm586 = vweird.f32 %v580
        %vm587 = vweird.f32 %v581
        %vm588 = vmor %vm586, %vm587
        %v589 = vsel %vm588, %v581, %v585
        %v590 = vand.u32 2147483647, %v580
        %vm591 = vcmp.eq.f32.partialorder %v590, 8.507059e+37
        %v592 = vand.u32 %v580, 2147483648
        %v593 = vor.u32 1.1754944e-38, %v592
        %v594 = vsel %vm591, %v593, %v589
        %v595 = vmul.f32 1.0, %v594
        %v596 = vtanh.pop %v576
        %598 = vrot.lane.b32.xlu0 %v542, 32
        %v599 = vpop.permute.xlu0 %598
        %v601 = vmul.f32 %v595, %v599
        %603 = vrot.lane.b32.xlu0 %v596, 64
        %v604 = vpop.permute.xlu0 %603
        %v606 = vmul.f32 %v595, %v604
        %608 = vrot.lane.b32.xlu0 %v606, 32
        %v609 = vpop.permute.xlu0 %608
        %v611 = vadd.f32 %v601, %v609
        %v612 = vtanh.pop %v611
        %614 = vrot.lane.b32.xlu0 %v612, 64
        %v615 = vpop.permute.xlu0 %614
        %v617 = vmul.f32 %v595, %v615
        %619 = vrot.lane.b32.xlu0 %v617, 32
        %v620 = vpop.permute.xlu0 %619
        %vm622 = vcmask 257024
        %623 = vst.msk [vmem:[#allocation2] sm:$0xf] %vm622, %v620
        %625 = vrot.lane.b32.xlu0 %v611, 96
        %v626 = vpop.permute.xlu0 %625
        %628 = vst.msk [vmem:[#allocation3] sm:$0xf] %vm622, %v626
        %s629 = scalar_lea.vmem [#allocation2], 4
        %v630 = vld [vmem:[%s629] sm:$0xf]
        %s631 = scalar_lea.vmem [#allocation3], 4
        %v632 = vld [vmem:[%s631] sm:$0xf]
        %v633 = vld [vmem:[#allocation12] sm:$0xff]
        %v634 = vld [vmem:[#allocation12 + $0x8] sm:$0xff]
        %v635 = vld [vmem:[#allocation12 + $0x10] sm:$0xff]
        %v636 = vld [vmem:[#allocation12 + $0x18] sm:$0xff]
        %v637 = vld [vmem:[#allocation14] sm:$0xff]
        %v638 = vld [vmem:[#allocation14 + $0x8] sm:$0xff]
        %v639 = vld [vmem:[#allocation14 + $0x10] sm:$0xff]
        %v640 = vld [vmem:[#allocation14 + $0x18] sm:$0xff]
        %v642 = vsel %vm547, %v630, 0
        %644 = vmatpush.msra.mxu0 0.0
        %645 = vmatpush.msra.mxu0 0.0
        %646 = vmatpush.msra.mxu0 0.0
        %647 = vmatpush.msra.mxu0 0.0
        %648 = vmatpush.msra.mxu0 0.0
        %649 = vmatpush.msra.mxu0 0.0
        %650 = vmatpush.msra.mxu0 0.0
        %651 = vmatpush.msra.mxu0 0.0
        %652 = vmatpush.msra.mxu0 0.0
        %653 = vmatpush.msra.mxu0 0.0
        %654 = vmatpush.msra.mxu0 0.0
        %655 = vmatpush.msra.mxu0 0.0
        %656 = vmatpush.msra.mxu0 %v640
        %657 = vmatpush.msra.mxu0 %v639
        %658 = vmatpush.msra.mxu0 %v638
        %659 = vmatpush.msra.mxu0 %v637
        %660 = vmatmul.f32.gmra.mxu0 %v642
        %v661 = vpop.f32.mrf.mxu0
        %v662 = vadd.f32 0.0, %v661
        %663 = vdwg.mxu0
        %v664 = vsel %vm547, %v620, 0
        %666 = vmatpush.msra.mxu0 0.0
        %667 = vmatpush.msra.mxu0 0.0
        %668 = vmatpush.msra.mxu0 0.0
        %669 = vmatpush.msra.mxu0 0.0
        %670 = vmatpush.msra.mxu0 0.0
        %671 = vmatpush.msra.mxu0 0.0
        %672 = vmatpush.msra.mxu0 0.0
        %673 = vmatpush.msra.mxu0 0.0
        %674 = vmatpush.msra.mxu0 0.0
        %675 = vmatpush.msra.mxu0 0.0
        %676 = vmatpush.msra.mxu0 0.0
        %677 = vmatpush.msra.mxu0 0.0
        %678 = vmatpush.msra.mxu0 %v636
        %679 = vmatpush.msra.mxu0 %v635
        %680 = vmatpush.msra.mxu0 %v634
        %681 = vmatpush.msra.mxu0 %v633
        %682 = vmatmul.f32.gmra.mxu0 %v664
        %v683 = vpop.f32.mrf.mxu0
        %v684 = vadd.f32 %v662, %v683
        %685 = vdwg.mxu0
        %v686 = vld [vmem:[%s8] sm:$0x1]
        %v688 = vperm.slane %v686, 0
        %v690 = vadd.f32 %v684, %v688
        %v691 = vxor.u32 %v690, 2147483648
        %v692 = vmul.f32 %v691, 1.442695
        %v693 = vpow.pop %v692
        %v694 = vadd.f32 %v693, 1.0
        %v695 = vrcp.pop %v694
        %v696 = vmul.f32 %v694, %v695
        %v697 = vsub.f32 1.0, %v696
        %v698 = vmul.f32 %v695, %v697
        %v699 = vadd.f32 %v695, %v698
        %vm700 = vweird.f32 %v694
        %vm701 = vweird.f32 %v695
        %vm702 = vmor %vm700, %vm701
        %v703 = vsel %vm702, %v695, %v699
        %v704 = vand.u32 2147483647, %v694
        %vm705 = vcmp.eq.f32.partialorder %v704, 8.507059e+37
        %v706 = vand.u32 %v694, 2147483648
        %v707 = vor.u32 1.1754944e-38, %v706
        %v708 = vsel %vm705, %v707, %v703
        %v709 = vmul.f32 1.0, %v708
        %v710 = vtanh.pop %v690
        %712 = vrot.lane.b32.xlu0 %v632, 32
        %v713 = vpop.permute.xlu0 %712
        %v715 = vmul.f32 %v709, %v713
        %717 = vrot.lane.b32.xlu0 %v710, 64
        %v718 = vpop.permute.xlu0 %717
        %v720 = vmul.f32 %v709, %v718
        %722 = vrot.lane.b32.xlu0 %v720, 32
        %v723 = vpop.permute.xlu0 %722
        %v725 = vadd.f32 %v715, %v723
        %v726 = vtanh.pop %v725
        %728 = vrot.lane.b32.xlu0 %v726, 64
        %v729 = vpop.permute.xlu0 %728
        %v731 = vmul.f32 %v709, %v729
        %733 = vrot.lane.b32.xlu0 %v731, 32
        %v734 = vpop.permute.xlu0 %733
        %736 = vst.msk [vmem:[%s629] sm:$0xf] %vm622, %v734
        %738 = vrot.lane.b32.xlu0 %v725, 96
        %v739 = vpop.permute.xlu0 %738
        %741 = vst.msk [vmem:[%s631] sm:$0xf] %vm622, %v739
        %v742 = vld [vmem:[#allocation15] sm:$0xff]
        %v743 = vld [vmem:[#allocation15 + $0x8] sm:$0xff]
        %v744 = vld [vmem:[#allocation15 + $0x10] sm:$0xff]
        %v745 = vld [vmem:[#allocation15 + $0x18] sm:$0xff]
        %v746 = vld [vmem:[%s10] sm:$0x1]
        %v748 = vperm.slane %v746, 0
        %v750 = vsel %vm547, %v734, 0
        %752 = vmatpush.msra.mxu0 0.0
        %753 = vmatpush.msra.mxu0 0.0
        %754 = vmatpush.msra.mxu0 0.0
        %755 = vmatpush.msra.mxu0 0.0
        %756 = vmatpush.msra.mxu0 0.0
        %757 = vmatpush.msra.mxu0 0.0
        %758 = vmatpush.msra.mxu0 0.0
        %759 = vmatpush.msra.mxu0 0.0
        %760 = vmatpush.msra.mxu0 0.0
        %761 = vmatpush.msra.mxu0 0.0
        %762 = vmatpush.msra.mxu0 0.0
        %763 = vmatpush.msra.mxu0 0.0
        %764 = vmatpush.msra.mxu0 %v745
        %765 = vmatpush.msra.mxu0 %v744
        %766 = vmatpush.msra.mxu0 %v743
        %767 = vmatpush.msra.mxu0 %v742
        %768 = vmatmul.f32.gmra.mxu0 %v750
        %v769 = vpop.f32.mrf.mxu0
        %v770 = vadd.f32 %v748, %v769
        %771 = vdwg.mxu0
        %772 = vst [vmem:[%s492] sm:$0xf] %v770
        %p773 = scmp.eq.s32.totalorder %s41, 7
        // Predicated region
        $region89: #{tpu_custom_call.1} parent=59 // pred_check
          %p774 = pneg %p773
        $region90: #{tpu_custom_call.1} parent=59 // pred_check_branch
          %776 = sbr.rel (%p774) target = $region92
        $region91: #{tpu_custom_call.1} parent=59 // pred_region
          %v777 = vld [vmem:[#allocation2] sm:$0xf]
          %v778 = vld [vmem:[#allocation2 + $0x4] sm:$0xf]
          %779 = vst.msk [vmem:[#allocation18] sm:$0xf] %vm622, %v777
          %780 = vst.msk [vmem:[#allocation18 + $0x4] sm:$0xf] %vm622, %v778
          %v781 = vld [vmem:[#allocation3] sm:$0xf]
          %v782 = vld [vmem:[#allocation3 + $0x4] sm:$0xf]
          %783 = vst.msk [vmem:[#allocation20] sm:$0xf] %vm622, %v781
          %784 = vst.msk [vmem:[#allocation20 + $0x4] sm:$0xf] %vm622, %v782
        $region92: #{tpu_custom_call.1} parent=59 // pred_fallthru
          _
        %s785 = sand.u32 %s259, 1
        %s786 = scalar_lea.sflag [#allocation8], %s785
        %s787 = sand.u32 %s259, 1
        %s788 = smul.addr %s787, 4
        %s789 = scalar_lea.vmem [#allocation17], %s788
        // Predicated region
        $region93: #{tpu_custom_call.1} parent=59 // pred_check
          %p790 = pneg %p269
        $region94: #{tpu_custom_call.1} parent=59 // pred_check_branch
          %792 = sbr.rel (%p790) target = $region96
        $region95: #{tpu_custom_call.1} parent=59 // pred_region
          %794 = vsyncadd %s786, 0
          %s795 = smul.addr %s41, 4
          %s796 = scalar_lea.hbm %s11, %s795
          %s798 = sshll.u32 %s789, 4
          %s799 = int_to_ptr.vmem [resolvable:$true] %s798
          %s800 = sshll.u32 %s796, 4
          %s801 = int_to_ptr.hbm [resolvable:$true] %s800
          %803 = dma.vmem_to_hbm [thread:$0]  %s799, 64, %s801, %s786
        $region96: #{tpu_custom_call.1} parent=59 // pred_fallthru
          _
        // Predicated region
        $region97: #{tpu_custom_call.1} parent=59 // pred_check
          %p804 = pneg %p290
        $region98: #{tpu_custom_call.1} parent=59 // pred_check_branch
          %806 = sbr.rel (%p804) target = $region100
        $region99: #{tpu_custom_call.1} parent=59 // pred_region
          %808 = vsyncadd [#allocation19], 0
          %s809 = sshll.u32 [#allocation18], 4
          %s810 = int_to_ptr.vmem [resolvable:$true] %s809
          %s811 = sshll.u32 %s12, 4
          %s812 = int_to_ptr.hbm [resolvable:$true] %s811
          %817 = dma.vmem_to_hbm [thread:$0]  %s810, 128, %s812, [#allocation19], 64, 64, 4
        $region100: #{tpu_custom_call.1} parent=59 // pred_fallthru
          _
        // Predicated region
        $region101: #{tpu_custom_call.1} parent=59 // pred_check
          %p818 = pneg %p311
        $region102: #{tpu_custom_call.1} parent=59 // pred_check_branch
          %820 = sbr.rel (%p818) target = $region104
        $region103: #{tpu_custom_call.1} parent=59 // pred_region
          %822 = vsyncadd [#allocation19], 0
          %s823 = sshll.u32 [#allocation20], 4
          %s824 = int_to_ptr.vmem [resolvable:$true] %s823
          %s825 = sshll.u32 %s13, 4
          %s826 = int_to_ptr.hbm [resolvable:$true] %s825
          %831 = dma.vmem_to_hbm [thread:$0]  %s824, 128, %s826, [#allocation19], 64, 64, 4
        $region104: #{tpu_custom_call.1} parent=59 // pred_fallthru
          _
        // Predicated region
        $region105: #{tpu_custom_call.1} parent=59 // pred_check
          %p832 = pneg %p290
        $region106: #{tpu_custom_call.1} parent=59 // pred_check_branch
          %834 = sbr.rel (%p832) target = $region108
        $region107: #{tpu_custom_call.1} parent=59 // pred_region
          %836 = dma.done [#allocation19], 128
        $region108: #{tpu_custom_call.1} parent=59 // pred_fallthru
          _
        // Predicated region
        $region109: #{tpu_custom_call.1} parent=59 // pred_check
          %p837 = pneg %p311
        $region110: #{tpu_custom_call.1} parent=59 // pred_check_branch
          %839 = sbr.rel (%p837) target = $region112
        $region111: #{tpu_custom_call.1} parent=59 // pred_region
          %841 = dma.done [#allocation19], 128
        $region112: #{tpu_custom_call.1} parent=59 // pred_fallthru
          _
      $region60: #{tpu_custom_call.1} parent=5 // pred_fallthru
        _
      %p842 = scmp.le.s32.totalorder 2, %s36
      // Predicated region
      $region113: #{tpu_custom_call.1} parent=5 // pred_check
        %p843 = pneg %p842
      $region114: #{tpu_custom_call.1} parent=5 // pred_check_branch
        %845 = sbr.rel (%p843) target = $region116
      $region115: #{tpu_custom_call.1} parent=5 // pred_region
        %s846 = ssub.s32 %s36, 2
        // Predicated region
        $region117: #{tpu_custom_call.1} parent=115 // pred_check
          %p847 = pneg %p275
        $region118: #{tpu_custom_call.1} parent=115 // pred_check_branch
          %849 = sbr.rel (%p847) target = $region120
        $region119: #{tpu_custom_call.1} parent=115 // pred_region
          %s850 = sand.u32 %s260, 1
          %s851 = scalar_lea.sflag [#allocation8], %s850
          %s852 = sand.u32 %s260, 1
          %s853 = smul.addr %s852, 4
          %s854 = scalar_lea.vmem [#allocation17], %s853
          %856 = dma.done %s851, 64
        $region120: #{tpu_custom_call.1} parent=115 // pred_fallthru
          _
      $region116: #{tpu_custom_call.1} parent=5 // pred_fallthru
        _
    $region6: #{tpu_custom_call.1} parent=1 // loop_footer
      %s40 = sadd.s32 1, %s36
    $region7: #{tpu_custom_call.1} parent=1 // loop_footer_branch
      %35 = sbr.rel target = $region3
    $region8: #{tpu_custom_call.1} parent=1 // loop_exit
      _
    %857 = vsyncpa [#allocation7], 1
    %s858 = scalar_lea.sflag [#allocation7], 1
    %859 = vsyncpa %s858, 1
    %860 = vsyncpa [#allocation10], 1
    %861 = vsyncpa [#allocation13], 1
    %862 = vsyncpa [#allocation16], 1
    %863 = vsyncpa [#allocation8], 1
    %s864 = scalar_lea.sflag [#allocation8], 1
    %865 = vsyncpa %s864, 1
    %866 = vsyncpa [#allocation19], 1

</llo_original>
